<compile_context>
chip_gen: v5e
topology: v5e:2x2
jax: 0.10.0
libtpu: 0.0.40
codegen_flags: <defaults>
</compile_context>

<pallas_src>
import jax
import jax.numpy as jnp
from jax import lax
from jax.experimental import pallas as pl
from jax.experimental.pallas import tpu as pltpu

BN_EPS = 1e-5


def _round_up(x, m):
    return ((x + m - 1) // m) * m


def _cdiv(a, b):
    return -(-a // b)


def _vmem_budgets():
    """Generation-aware (vmem_limit_bytes, tile_budget_bytes)."""
    try:
        cap = getattr(pltpu.get_tpu_info(), "vmem_capacity_bytes", None)
    except Exception:
        cap = None
    if cap is None:
        cap = 64 * 1024 * 1024                       # assume the smallest (v7x-like) part
    if cap >= 96 * 1024 * 1024:                      # v5e / v6e: 128 MiB physical VMEM
        return 112 * 1024 * 1024, 72 * 1024 * 1024
    return 48 * 1024 * 1024, 28 * 1024 * 1024        # v7x: 64 MiB per TensorCore


def _tile_cap(per_row_bytes, resident_bytes, tile_budget, max_rows=1024):
    cap = max((tile_budget - resident_bytes) // max(per_row_bytes, 1), 8)
    cap = min(cap, max_rows)
    if cap >= 256:
        return (cap // 256) * 256
    return max((cap // 8) * 8, 8)


def _balanced_tile(n_rows, cap, chunk_multiple=1):
    """Balanced row tile (<=8 padded rows per tile); prefer a 256-aligned MXU
    M-tile only when the extra padding is small."""
    n8 = _round_up(max(n_rows, 1), 8)
    nt = _round_up(_cdiv(n8, cap), chunk_multiple)
    bal = _cdiv(n8, nt)
    tile = _round_up(bal, 8)
    tile256 = _round_up(bal, 256)
    if tile >= 256 and tile256 <= cap and (tile256 - tile) * nt <= max(n8 // 16, 8):
        tile = tile256
    return tile, nt


# --------------------------------------------------------------------------
# Phase 1: per-feature batch statistics (per-core, per-sublane partial sums).
# --------------------------------------------------------------------------
def _bn_stats_kernel(x_ref, sum_ref, sqsum_ref):
    i = pl.program_id(1)

    @pl.when(i == 0)
    def _():
        sum_ref[...] = jnp.zeros_like(sum_ref)
        sqsum_ref[...] = jnp.zeros_like(sqsum_ref)

    # x tile is pre-shaped (groups, 8, d_pack): reducing axis 0 is pure vector adds
    # (no per-tile XLU cross-sublane reduce); the 8-sublane collapse happens once
    # in the wrapper. Zero-padded rows contribute nothing (divide by true N later).
    x = x_ref[...].astype(jnp.float32)
    sum_ref[...] += jnp.sum(x, axis=0)
    sqsum_ref[...] += jnp.sum(x * x, axis=0)


def _batch_stats(x, gamma, beta, vmem_limit, tile_budget):
    n, d = x.shape
    # Small-D lane packing: view k consecutive rows as one lane-dense (k*d)-wide row
    # so all 128 lanes carry data. Free row-major reshape; same HBM bytes.
    k = 1 if d >= 128 else max(1, 128 // d)
    d_pack = k * d
    n_pack = _cdiv(n, k)

    cap = _tile_cap(2 * x.dtype.itemsize * d_pack, 0, tile_budget)
    _, nt = _balanced_tile(n_pack, cap, 1)
    num_split = 2 if nt >= 2 else 1          # shard the DMA-bound stats pass across
                                             # both TCs on v7x (harmless on 1-TC parts)
    tile_p, total_tiles = _balanced_tile(n_pack, cap, num_split)
    tiles_per_core = total_tiles // num_split
    n_pack_pad = total_tiles * tile_p
    n_pad = n_pack_pad * k

    x_p = x if n_pad == n else jnp.pad(x, ((0, n_pad - n), (0, 0)))
    x3 = x_p.reshape(n_pack_pad // 8, 8, d_pack)     # (groups, 8, d_pack) view
    g_tile = tile_p // 8

    cost = pl.CostEstimate(
        flops=int(3 * n_pack_pad * d_pack),
        transcendentals=0,
        bytes_accessed=int(n_pack_pad * d_pack * x.dtype.itemsize
                           + 2 * num_split * 8 * d_pack * 4))

    sums, sqsums = pl.pallas_call(
        _bn_stats_kernel,
        out_shape=(jax.ShapeDtypeStruct((num_split * 8, d_pack), jnp.float32),
                   jax.ShapeDtypeStruct((num_split * 8, d_pack), jnp.float32)),
        grid=(num_split, tiles_per_core),
        in_specs=[pl.BlockSpec(
            (g_tile, 8, d_pack),
            lambda c, i, t=tiles_per_core: (c * t + i, 0, 0))],
        out_specs=(pl.BlockSpec((8, d_pack), lambda c, i: (c, 0)),
                   pl.BlockSpec((8, d_pack), lambda c, i: (c, 0))),
        compiler_params=pltpu.CompilerParams(
            dimension_semantics=("parallel", "arbitrary"),
            vmem_limit_bytes=vmem_limit),
        cost_estimate=cost,
    )(x3)

    # Collapse (core, sublane, lane-group) partials and finish BN math in plain XLA
    # (D elements — negligible next to the streamed stats pass).
    tot_sum = jnp.sum(sums.reshape(-1, k, d), axis=(0, 1))
    tot_sq = jnp.sum(sqsums.reshape(-1, k, d), axis=(0, 1))
    inv_n = jnp.float32(1.0 / n)
    mean = tot_sum * inv_n
    var = jnp.maximum(tot_sq * inv_n - mean * mean, 0.0)
    inv_std = lax.rsqrt(var + BN_EPS)
    scale = gamma.astype(jnp.float32) * inv_std
    shift = beta.astype(jnp.float32) - mean * scale
    return scale.reshape(1, d), shift.reshape(1, d)


# --------------------------------------------------------------------------
# Phase 2a: normalize + classify (feature also written).
# --------------------------------------------------------------------------
def _bn_linear_kernel(x_ref, scale_ref, shift_ref, w_ref, feat_ref, score_ref):
    x = x_ref[...].astype(jnp.float32)
    feat = x * scale_ref[...] + shift_ref[...]               # f32 VPU normalize
    feat_ref[...] = feat.astype(feat_ref.dtype)
    score_ref[...] = jnp.dot(feat.astype(jnp.bfloat16), w_ref[...],
                             preferred_element_type=jnp.float32).astype(score_ref.dtype)


def _normalize_and_classify(x, scale, shift, w_t, vmem_limit, tile_budget):
    n, d = x.shape
    c_pad = w_t.shape[1]
    w_bytes = 2 * d * c_pad * 2                      # resident bf16 W (double-buffered)
    per_row = 2 * x.dtype.itemsize * d + 2 * 4 * d + 2 * 4 * c_pad
    cap = _tile_cap(per_row, w_bytes, tile_budget)
    tile_n, num_tiles = _balanced_tile(n, cap, 1)
    n_pad = num_tiles * tile_n
    x_p = x if n_pad == n else jnp.pad(x, ((0, n_pad - n), (0, 0)))

    cost = pl.CostEstimate(
        flops=int(2 * n_pad * d * c_pad + 2 * n_pad * d),
        transcendentals=0,
        bytes_accessed=int(n_pad * d * (x.dtype.itemsize + 4)
                           + n_pad * c_pad * 4 + d * c_pad * 2))

    feat_p, score_p = pl.pallas_call(
        _bn_linear_kernel,
        out_shape=(jax.ShapeDtypeStruct((n_pad, d), jnp.float32),
                   jax.ShapeDtypeStruct((n_pad, c_pad), jnp.float32)),
        grid=(num_tiles,),
        in_specs=[
            pl.BlockSpec((tile_n, d), lambda i: (i, 0)),
            pl.BlockSpec((1, d), lambda i: (0, 0)),
            pl.BlockSpec((1, d), lambda i: (0, 0)),
            pl.BlockSpec((d, c_pad), lambda i: (0, 0)),      # W resident across N-tiles
        ],
        out_specs=(
            pl.BlockSpec((tile_n, d), lambda i: (i, 0)),
            pl.BlockSpec((tile_n, c_pad), lambda i: (i, 0)),
        ),
        compiler_params=pltpu.CompilerParams(
            dimension_semantics=("parallel",), vmem_limit_bytes=vmem_limit),
        cost_estimate=cost,
    )(x_p, scale, shift, w_t)
    return feat_p, score_p


# --------------------------------------------------------------------------
# Phase 2b: score-only path — BN folded into the matmul (no feature writeback).
# --------------------------------------------------------------------------
def _folded_linear_kernel(x_ref, w_ref, bias_ref, score_ref):
    acc = jnp.dot(x_ref[...].astype(jnp.bfloat16), w_ref[...],
                  preferred_element_type=jnp.float32)
    score_ref[...] = (acc + bias_ref[...]).astype(score_ref.dtype)


def _classify_folded(x, scale, shift, w_t, vmem_limit, tile_budget):
    n, d = x.shape
    c_pad = w_t.shape[1]
    # score = (x*scale + shift) @ W = x @ (scale*W) + shift @ W
    w_fold = (w_t.astype(jnp.float32) * scale.reshape(d, 1)).astype(jnp.bfloat16)
    bias = shift @ w_t.astype(jnp.float32)           # (1, c_pad) f32

    w_bytes = 2 * d * c_pad * 2
    per_row = 2 * x.dtype.itemsize * d + 2 * 4 * c_pad
    cap = _tile_cap(per_row, w_bytes, tile_budget)
    tile_n, num_tiles = _balanced_tile(n, cap, 1)
    n_pad = num_tiles * tile_n
    x_p = x if n_pad == n else jnp.pad(x, ((0, n_pad - n), (0, 0)))

    cost = pl.CostEstimate(
        flops=int(2 * n_pad * d * c_pad),
        transcendentals=0,
        bytes_accessed=int(n_pad * d * x.dtype.itemsize + n_pad * c_pad * 4
                           + d * c_pad * 2))

    score_p = pl.pallas_call(
        _folded_linear_kernel,
        out_shape=jax.ShapeDtypeStruct((n_pad, c_pad), jnp.float32),
        grid=(num_tiles,),
        in_specs=[
            pl.BlockSpec((tile_n, d), lambda i: (i, 0)),
            pl.BlockSpec((d, c_pad), lambda i: (0, 0)),
            pl.BlockSpec((1, c_pad), lambda i: (0, 0)),
        ],
        out_specs=pl.BlockSpec((tile_n, c_pad), lambda i: (i, 0)),
        compiler_params=pltpu.CompilerParams(
            dimension_semantics=("parallel",), vmem_limit_bytes=vmem_limit),
        cost_estimate=cost,
    )(x_p, w_fold, bias)
    return score_p


# --------------------------------------------------------------------------
# Wrapper
# --------------------------------------------------------------------------
def graph_classifier_forward(x, gamma, beta, weight, *, need_feature=True):
    """x: (N, D). weight: (class_num, in_dim) as in nn.Linear.

    need_feature=True  -> (feature, cls_score)
    need_feature=False -> cls_score only (training-mode output), BN folded into W.
    """
    n, d = x.shape
    c = weight.shape[0]
    vmem_limit, tile_budget = _vmem_budgets()

    # Lane-dense score output: pad class dim to a multiple of 128 (zero W columns).
    c_pad = _round_up(c, 128)
    w_t = jnp.pad(weight.T.astype(jnp.bfloat16), ((0, 0), (0, c_pad - c)))

    scale, shift = _batch_stats(x, gamma, beta, vmem_limit, tile_budget)

    if need_feature:
        feat_p, score_p = _normalize_and_classify(x, scale, shift, w_t,
                                                  vmem_limit, tile_budget)
        return feat_p[:n], score_p[:n, :c]
    score_p = _classify_folded(x, scale, shift, w_t, vmem_limit, tile_budget)
    return score_p[:n, :c]


def init_params(key, in_dim, class_num):
    # BatchNorm1d: weights_init_kaiming -> weight=1, bias=0 (bias also frozen)
    gamma = jnp.ones((in_dim,), jnp.float32)
    beta = jnp.zeros((in_dim,), jnp.float32)
    # Linear: weights_init_classifier -> normal(std=0.001), no bias
    weight = 0.001 * jax.random.normal(key, (class_num, in_dim), jnp.float32)
    return gamma, beta, weight


if __name__ == "__main__":
    key = jax.random.PRNGKey(0)

    def check(batch, in_dim, class_num, kseed):
        kx, kw = jax.random.split(jax.random.fold_in(key, kseed))
        # Input mimics an (N, in_dim, 1) tensor that .squeeze() turns into (N, in_dim)
        x = jax.random.normal(kx, (batch, in_dim, 1), jnp.float32)
        x2d = jnp.squeeze(x, axis=-1)
        gamma, beta, weight = init_params(kw, in_dim, class_num)

        feature, cls_score = graph_classifier_forward(x2d, gamma, beta, weight)
        score_only = graph_classifier_forward(x2d, gamma, beta, weight,
                                              need_feature=False)
        jax.block_until_ready((feature, cls_score, score_only))

        # pure-JAX reference (scores use bf16 MXU inputs -> looser tol)
        mean = jnp.mean(x2d, axis=0, keepdims=True)
        var = jnp.mean((x2d - mean) ** 2, axis=0, keepdims=True)
        ref_feat = (x2d - mean) / jnp.sqrt(var + BN_EPS) * gamma + beta
        ref_score = ref_feat @ weight.T
        assert feature.shape == (batch, in_dim)
        assert cls_score.shape == (batch, class_num)
        assert score_only.shape == (batch, class_num)
        assert jnp.allclose(feature, ref_feat, atol=1e-4, rtol=1e-4)
        assert jnp.allclose(cls_score, ref_score, atol=1e-3, rtol=2e-2)
        assert jnp.allclose(score_only, ref_score, atol=1e-3, rtol=2e-2)

    # Small case matching the module example (exercises the small-D lane packing).
    check(batch=8, in_dim=32, class_num=16, kseed=1)
    # Larger case exercising multi-tile phases and the two-core phase-1 stats split.
    check(batch=2500, in_dim=96, class_num=10, kseed=2)
    print("KERNEL_OK")
</pallas_src>

<mosaic_0001>
module attributes {stable_mosaic.version = 11 : i64} {
  func.func @_bn_stats_kernel(%arg0: i32, %arg1: i32, %arg2: memref<1x8x128xf32, #tpu.memory_space<vmem>>, %arg3: memref<8x128xf32, #tpu.memory_space<vmem>>, %arg4: memref<8x128xf32, #tpu.memory_space<vmem>>) attributes {dimension_semantics = [#tpu.dimension_semantics<parallel>, #tpu.dimension_semantics<arbitrary>], iteration_bounds = array<i64: 1, 1>, scalar_prefetch = 0 : i64, scratch_operands = 0 : i64, tpu.core_type = #tpu.core_type<tc>, window_params = [{transform_indices = @transform_0, window_bounds = array<i64: 1, 8, 128>}, {transform_indices = @transform_1, window_bounds = array<i64: 8, 128>}, {transform_indices = @transform_2, window_bounds = array<i64: 8, 128>}]} {
    %c0_i32 = arith.constant 0 : i32
    %0 = arith.cmpi eq, %arg1, %c0_i32 : i32
    %1 = arith.extui %0 : i1 to i32
    %c0_i32_0 = arith.constant 0 : i32
    %2 = arith.cmpi ne, %1, %c0_i32_0 : i32
    scf.if %2 {
      %cst_12 = arith.constant 0.000000e+00 : f32
      %13 = vector.broadcast %cst_12 : f32 to vector<8x128xf32>
      %c0_13 = arith.constant 0 : index
      %c0_14 = arith.constant 0 : index
      %14 = vector.load %arg3[%c0_13, %c0_14] : memref<8x128xf32, #tpu.memory_space<vmem>>, vector<8x128xf32>
      tpu.vector_store %arg3[%c0_13, %c0_14], %13 {strides = array<i32>} : memref<8x128xf32, #tpu.memory_space<vmem>>, vector<8x128xf32>,
      %cst_15 = arith.constant 0.000000e+00 : f32
      %15 = vector.broadcast %cst_15 : f32 to vector<8x128xf32>
      %c0_16 = arith.constant 0 : index
      %c0_17 = arith.constant 0 : index
      %16 = vector.load %arg4[%c0_16, %c0_17] : memref<8x128xf32, #tpu.memory_space<vmem>>, vector<8x128xf32>
      tpu.vector_store %arg4[%c0_16, %c0_17], %15 {strides = array<i32>} : memref<8x128xf32, #tpu.memory_space<vmem>>, vector<8x128xf32>,
    } else {
    }
    %c0 = arith.constant 0 : index
    %c0_1 = arith.constant 0 : index
    %c0_2 = arith.constant 0 : index
    %3 = vector.load %arg2[%c0, %c0_1, %c0_2] : memref<1x8x128xf32, #tpu.memory_space<vmem>>, vector<1x8x128xf32>
    %c0_3 = arith.constant 0 : index
    %c0_4 = arith.constant 0 : index
    %4 = vector.load %arg3[%c0_3, %c0_4] : memref<8x128xf32, #tpu.memory_space<vmem>>, vector<8x128xf32>
    %cst = arith.constant dense<0.000000e+00> : vector<8x128xf32>
    %5 = vector.multi_reduction <add>, %3, %cst [0] : vector<1x8x128xf32> to vector<8x128xf32>
    %6 = arith.addf %4, %5 : vector<8x128xf32>
    %c0_5 = arith.constant 0 : index
    %c0_6 = arith.constant 0 : index
    %7 = vector.load %arg3[%c0_5, %c0_6] : memref<8x128xf32, #tpu.memory_space<vmem>>, vector<8x128xf32>
    tpu.vector_store %arg3[%c0_5, %c0_6], %6 {strides = array<i32>} : memref<8x128xf32, #tpu.memory_space<vmem>>, vector<8x128xf32>,
    %c0_7 = arith.constant 0 : index
    %c0_8 = arith.constant 0 : index
    %8 = vector.load %arg4[%c0_7, %c0_8] : memref<8x128xf32, #tpu.memory_space<vmem>>, vector<8x128xf32>
    %9 = arith.mulf %3, %3 : vector<1x8x128xf32>
    %cst_9 = arith.constant dense<0.000000e+00> : vector<8x128xf32>
    %10 = vector.multi_reduction <add>, %9, %cst_9 [0] : vector<1x8x128xf32> to vector<8x128xf32>
    %11 = arith.addf %8, %10 : vector<8x128xf32>
    %c0_10 = arith.constant 0 : index
    %c0_11 = arith.constant 0 : index
    %12 = vector.load %arg4[%c0_10, %c0_11] : memref<8x128xf32, #tpu.memory_space<vmem>>, vector<8x128xf32>
    tpu.vector_store %arg4[%c0_10, %c0_11], %11 {strides = array<i32>} : memref<8x128xf32, #tpu.memory_space<vmem>>, vector<8x128xf32>,
    return
  }
  func.func @transform_0(%arg0: i32, %arg1: i32) -> (i32, i32, i32) {
    %c1_i32 = arith.constant 1 : i32
    %0 = arith.muli %arg0, %c1_i32 : i32
    %1 = arith.addi %0, %arg1 : i32
    %c0_i32 = arith.constant 0 : i32
    %c0_i32_0 = arith.constant 0 : i32
    %c0_i32_1 = arith.constant 0 : i32
    return %1, %c0_i32, %c0_i32_0 : i32, i32, i32
  }
  func.func @transform_1(%arg0: i32, %arg1: i32) -> (i32, i32) {
    %c0_i32 = arith.constant 0 : i32
    %c0_i32_0 = arith.constant 0 : i32
    return %arg0, %c0_i32 : i32, i32
  }
  func.func @transform_2(%arg0: i32, %arg1: i32) -> (i32, i32) {
    %c0_i32 = arith.constant 0 : i32
    %c0_i32_0 = arith.constant 0 : i32
    return %arg0, %c0_i32 : i32, i32
  }
}

</mosaic_0001>

<llo_original>
// kernel: tpu_custom_call.1
$region0: #{tpu_custom_call.1}
  #allocation0 [shape = 'u32[]', space=smem, size = 0x4, offset = 0x4, fixed_abs, tag = 'smem constant byte address 0x4 - core index']
  #allocation1 [shape = 'u32[72,128]{1,0:T(1,128)}', space=vmem, size = 0x9000, scoped, tag = 'internal scratch']
  %s0 = inlined_call_operand.hbm [shape: f32[1,8,128], index: 0, kind: input, shape index: {}]
  %s1 = inlined_call_operand.hbm [shape: f32[8,128], index: 1, kind: output, shape index: {0}]
  %s2 = inlined_call_operand.hbm [shape: f32[8,128], index: 2, kind: output, shape index: {1}]
  %3 = xla_tuple %s1, %s2
  %s4 = sld [smem:[#allocation0]]
  $region30: #{tpu_custom_call.1} parent=0
    _
  %s6 = ssub.s32 1, %s4
  %s7 = scalar_select 0, %s6, %s4
  $region1: #{tpu_custom_call.1} parent=0
    #allocation2 [shape = 'u8[4096]{0}', space=vmem, size = 0x1000, scoped, tag = 'input window, operand 0, single buffered']
    #allocation3 [shape = 's32[1]{0}', space=sflag, size = 0x4, scoped, tag = 'scoped memory for tpu_custom_call.1']
    #allocation4 [shape = 's32[1]{0}', space=sflag, size = 0x4, scoped, tag = 'scoped memory for tpu_custom_call.1']
    #allocation5 [shape = 'u8[4096]{0}', space=vmem, size = 0x1000, scoped, tag = 'output window, operand 0, single buffered']
    #allocation6 [shape = 'u8[4096]{0}', space=vmem, size = 0x1000, scoped, tag = 'output window, operand 1, single buffered']
    #allocation7 [shape = 's32[1]{0}', space=sflag, size = 0x4, scoped, tag = 'scoped memory for tpu_custom_call.1']
    %8 = vsyncpa [#allocation3], 0
    %9 = vsyncpa [#allocation4], 0
    %10 = vsyncpa [#allocation7], 0
    // Predicated region
    $region2: #{tpu_custom_call.1} parent=1 // pred_check
      _
    $region3: #{tpu_custom_call.1} parent=1 // pred_check_branch
      %12 = sbr.rel (0) target = $region5
    $region4: #{tpu_custom_call.1} parent=1 // pred_region
      %s13 = sadd.s32 0, 0
      %15 = vsyncadd [#allocation3], 0
      %s16 = smul.addr %s13, 8
      %s17 = scalar_lea.hbm %s0, %s16
      %s19 = sshll.u32 %s17, 4
      %s20 = int_to_ptr.hbm [resolvable:$true] %s19
      %s21 = sshll.u32 [#allocation2], 4
      %s22 = int_to_ptr.vmem [resolvable:$true] %s21
      %24 = dma.hbm_to_vmem [thread:$0]  %s20, 128, %s22, [#allocation3]
    $region5: #{tpu_custom_call.1} parent=1 // pred_fallthru
      _
    // Predicated region
    $region6: #{tpu_custom_call.1} parent=1 // pred_check
      _
    $region7: #{tpu_custom_call.1} parent=1 // pred_check_branch
      %26 = sbr.rel (0) target = $region9
    $region8: #{tpu_custom_call.1} parent=1 // pred_region
      %28 = dma.done [#allocation3], 128
    $region9: #{tpu_custom_call.1} parent=1 // pred_fallthru
      _
    %s29 = sadd.s32 0, 0
    %p30 = scmp.eq.s32.totalorder 0, 0
    // Predicated region
    $region10: #{tpu_custom_call.1} parent=1 // pred_check
      %p31 = pneg %p30
    $region11: #{tpu_custom_call.1} parent=1 // pred_check_branch
      %33 = sbr.rel (%p31) target = $region13
    $region12: #{tpu_custom_call.1} parent=1 // pred_region
      %34 = vst [vmem:[#allocation5] sm:$0xff] 0.0
      %35 = vst [vmem:[#allocation6] sm:$0xff] 0.0
    $region13: #{tpu_custom_call.1} parent=1 // pred_fallthru
      _
    %v36 = vld [vmem:[#allocation2] sm:$0xff]
    %v37 = vld [vmem:[#allocation5] sm:$0xff]
    %v38 = vadd.f32 %v36, 0.0
    %v39 = vadd.f32 %v37, %v38
    %40 = vst [vmem:[#allocation5] sm:$0xff] %v39
    %v41 = vld [vmem:[#allocation6] sm:$0xff]
    %v42 = vmul.f32 %v36, %v36
    %v43 = vadd.f32 %v42, 0.0
    %v44 = vadd.f32 %v41, %v43
    %45 = vst [vmem:[#allocation6] sm:$0xff] %v44
    // Predicated region
    $region14: #{tpu_custom_call.1} parent=1 // pred_check
      _
    $region15: #{tpu_custom_call.1} parent=1 // pred_check_branch
      %47 = sbr.rel (0) target = $region17
    $region16: #{tpu_custom_call.1} parent=1 // pred_region
      %49 = vsyncadd [#allocation4], 0
      %s51 = sshll.u32 [#allocation5], 4
      %s52 = int_to_ptr.vmem [resolvable:$true] %s51
      %s53 = sshll.u32 %s1, 4
      %s54 = int_to_ptr.hbm [resolvable:$true] %s53
      %56 = dma.vmem_to_hbm [thread:$0]  %s52, 128, %s54, [#allocation4]
    $region17: #{tpu_custom_call.1} parent=1 // pred_fallthru
      _
    // Predicated region
    $region18: #{tpu_custom_call.1} parent=1 // pred_check
      _
    $region19: #{tpu_custom_call.1} parent=1 // pred_check_branch
      %58 = sbr.rel (0) target = $region21
    $region20: #{tpu_custom_call.1} parent=1 // pred_region
      %60 = vsyncadd [#allocation7], 0
      %s62 = sshll.u32 [#allocation6], 4
      %s63 = int_to_ptr.vmem [resolvable:$true] %s62
      %s64 = sshll.u32 %s2, 4
      %s65 = int_to_ptr.hbm [resolvable:$true] %s64
      %67 = dma.vmem_to_hbm [thread:$0]  %s63, 128, %s65, [#allocation7]
    $region21: #{tpu_custom_call.1} parent=1 // pred_fallthru
      _
    // Predicated region
    $region22: #{tpu_custom_call.1} parent=1 // pred_check
      _
    $region23: #{tpu_custom_call.1} parent=1 // pred_check_branch
      %69 = sbr.rel (0) target = $region25
    $region24: #{tpu_custom_call.1} parent=1 // pred_region
      %71 = dma.done [#allocation4], 128
    $region25: #{tpu_custom_call.1} parent=1 // pred_fallthru
      _
    // Predicated region
    $region26: #{tpu_custom_call.1} parent=1 // pred_check
      _
    $region27: #{tpu_custom_call.1} parent=1 // pred_check_branch
      %73 = sbr.rel (0) target = $region29
    $region28: #{tpu_custom_call.1} parent=1 // pred_region
      %75 = dma.done [#allocation7], 128
    $region29: #{tpu_custom_call.1} parent=1 // pred_fallthru
      _
    %76 = vsyncpa [#allocation3], 1
    %77 = vsyncpa [#allocation4], 1
    %78 = vsyncpa [#allocation7], 1

</llo_original>
